<compile_context>
chip_gen: v5e
topology: v5e:2x2
jax: 0.10.0
libtpu: 0.0.40
codegen_flags: <defaults>
</compile_context>

<pallas_src>
import jax
import jax.numpy as jnp
from jax.experimental import pallas as pl
from jax.experimental.pallas import tpu as pltpu


_LANE = 128
_SUBLANE_F32 = 8
# Lane-dense candidates, widest first: wide slabs mean fewer rows, fewer
# store descriptors and unmasked `vst` (the biggest single measured lever).
_LANE_CANDIDATES = (32768, 16384, 8192, 4096, 2048, 1024, 512, 256, 128)
_MIB = 1024 * 1024


def _base_body_kernel(x_ref, o_ref):
    # TODO(synk): BaseBody.forward raises NotImplemented in PyTorch; a concrete
    # subclass places its conv / MLP feature extraction here.  The abstract
    # base is the identity on the lane-dense flattened state.
    o_ref[...] = x_ref[...]


def _sublane_for(dtype) -> int:
    """Native packed tile height: 8 for f32, 16 for bf16, 32 for int8/fp8."""
    itemsize = jnp.dtype(dtype).itemsize
    return max(_SUBLANE_F32, (_SUBLANE_F32 * 4) // max(1, itemsize))


def _vmem_capacity_bytes() -> int:
    """Physical per-core VMEM, best effort; conservative fallback = v7x 64 MiB."""
    try:
        return int(pltpu.get_tpu_info().vmem_capacity_bytes)
    except Exception:
        return 64 * _MIB


def _num_tensorcores() -> int:
    """Best-effort TensorCore count (2 on v7x, 1 on v5e/v6e)."""
    try:
        info = pltpu.get_tpu_info()
        for attr in ("num_cores", "core_count", "tensorcore_count",
                     "num_tensorcores"):
            n = getattr(info, attr, None)
            if isinstance(n, int) and n > 1:
                return n
    except Exception:
        pass
    try:
        kind = jax.devices()[0].device_kind.lower()
        if "v7" in kind or "7x" in kind:
            return 2
    except Exception:
        pass
    return 1


def _pick_layout(total_elems: int, sublane: int):
    """Lane-dense 2-D (rows, lane) factorization of the flattened state.

    Prefers the widest lane (multiple of 128) whose row count is a multiple
    of the dtype's packed sublane height.  Returns None if the element count
    is not divisible by 128 at all.
    """
    fallback = None
    for cand in _LANE_CANDIDATES:
        if total_elems % cand == 0:
            rows = total_elems // cand
            if rows % sublane == 0:
                return rows, cand            # lane-dense and sublane-aligned
            if fallback is None:
                fallback = (rows, cand)      # lane-dense only
    return fallback


def _pick_tile_m(rows: int, lane: int, itemsize: int, sublane: int,
                 block_bytes: int) -> int:
    """Largest sublane-multiple row tile within the per-block VMEM budget."""
    budget_rows = max(sublane, block_bytes // max(1, lane * itemsize))
    best = 0
    t = sublane
    while t <= min(rows, budget_rows):
        if rows % t == 0:
            best = t
        t += sublane
    if best == 0:
        if rows <= budget_rows:
            best = rows                       # full-extent block: always legal
        else:
            # No clean divisor within budget: sublane-aligned tile; Pallas
            # masks the ragged last block (fine for the identity scaffold).
            best = max((budget_rows // sublane) * sublane, sublane)
    return best


class BaseBodyPallas:
    """JAX/Pallas mirror of PPO BaseBody (abstract feature extractor).

    The abstract base performs no compute, so the default path returns the
    state untouched (no kernel launch).  The Pallas scaffold below is what a
    concrete subclass extends with a real feature extractor; it is exercised
    by setting `use_pallas_scaffold=True`.
    """

    def __init__(self, input_shape: tuple, feature_dim: int, *,
                 use_pallas_scaffold: bool = False, block_bytes: int = None):
        self.input_shape = tuple(input_shape)   # (C, H, W), PyTorch convention
        self.feature_dim = feature_dim          # stored, unused by the base
        self.use_pallas_scaffold = use_pallas_scaffold

        vmem = _vmem_capacity_bytes()
        # BlockSpec double-buffers input and output blocks => peak ~4x block.
        # vmem // 16 keeps the peak near 1/4 of physical VMEM on every chip
        # (v5e/v6e: 8 MiB blocks, v7x: 4 MiB blocks), leaving headroom for a
        # subclass's weights / accumulators.
        derived = min(8 * _MIB, max(_MIB // 2, vmem // 16))
        self._block_bytes = int(block_bytes) if block_bytes else derived
        # Explicit scoped-VMEM limit = double-buffered peak plus margin
        # (v5e's *default* scoped limit is only 16 MiB, so set it explicitly).
        limit = min(vmem - 4 * _MIB, 4 * self._block_bytes + 4 * _MIB)
        self._vmem_limit = max(limit, 16 * _MIB)

    # ------------------------------------------------------------------ #

    def __call__(self, state):
        # Abstract base == identity: return the state untouched — zero HBM
        # traffic, zero VMEM, no kernel launch (top perf-review item; this
        # also subsumes the weaker input_output_aliases={0:0} suggestion).
        if not self.use_pallas_scaffold:
            return state
        return self._pallas_forward(state)

    # ------------------------------------------------------------------ #

    def _pallas_forward(self, state):
        orig_shape = state.shape
        total = int(state.size)
        itemsize = jnp.dtype(state.dtype).itemsize
        sublane = _sublane_for(state.dtype)

        layout = _pick_layout(total, sublane)
        if layout is None:
            # Flattened size not divisible by 128: keep the last dim at the
            # full (C*H*W) extent (always legal) but still TILE the row axis
            # so the footprint stays bounded and DMA double-buffers.
            flat = state.reshape(orig_shape[0], -1)
            rows, lane = flat.shape
        else:
            rows, lane = layout
            flat = state.reshape(rows, lane)

        tile_m = _pick_tile_m(rows, lane, itemsize, sublane, self._block_bytes)
        grid_m = pl.cdiv(rows, tile_m)

        cost = pl.CostEstimate(
            flops=0, transcendentals=0,
            bytes_accessed=2 * total * itemsize,   # read + write, no compute
        )

        def run(dim_sems):
            return pl.pallas_call(
                _base_body_kernel,
                out_shape=jax.ShapeDtypeStruct((rows, lane), flat.dtype),
                grid=(grid_m,),
                in_specs=[pl.BlockSpec((tile_m, lane), lambda i: (i, 0))],
                out_specs=pl.BlockSpec((tile_m, lane), lambda i: (i, 0)),
                compiler_params=pltpu.CompilerParams(
                    dimension_semantics=dim_sems,
                    vmem_limit_bytes=self._vmem_limit,
                ),
                cost_estimate=cost,
            )(flat)

        if _num_tensorcores() >= 2:
            # Engage both v7x TensorCores on the independent row tiles.
            try:
                out_flat = run((pltpu.CORE_PARALLEL,))
            except Exception:
                out_flat = run(("parallel",))
        else:
            out_flat = run(("parallel",))

        # Return in the original NCHW state shape (identity body).
        return out_flat.reshape(orig_shape)


if __name__ == "__main__":
    key = jax.random.PRNGKey(0)

    N, C, H, W = 2, 4, 16, 16
    feature_dim = 32
    state = jax.random.normal(key, (N, C, H, W), dtype=jnp.float32)

    # 1) Default path: the abstract base is the identity -> short-circuit,
    #    no kernel launch, no HBM traffic.
    body = BaseBodyPallas((C, H, W), feature_dim)
    out = jax.block_until_ready(body(state))
    assert out.shape == state.shape and jnp.allclose(out, state)

    # 2) Pallas scaffold path (what a concrete subclass would extend),
    #    small shape -> single lane-dense (8, 256) block.
    body_k = BaseBodyPallas((C, H, W), feature_dim, use_pallas_scaffold=True)
    out_k = jax.block_until_ready(body_k(state))
    assert out_k.shape == state.shape and jnp.allclose(out_k, state)

    # 3) Multi-tile pipelined path: small per-block budget forces the row
    #    axis to split across several grid steps (double-buffered DMA).
    state2 = jax.random.normal(jax.random.PRNGKey(0), (256, 4, 32, 32),
                               dtype=jnp.float32)
    body_mt = BaseBodyPallas((4, 32, 32), feature_dim,
                             use_pallas_scaffold=True, block_bytes=512 * 1024)
    out2 = jax.block_until_ready(body_mt(state2))
    assert out2.shape == state2.shape and jnp.allclose(out2, state2)

    # 4) bf16 exercises the dtype-aware sublane packing (16 rows per vreg).
    state3 = state.astype(jnp.bfloat16)
    out3 = jax.block_until_ready(body_k(state3))
    assert out3.shape == state3.shape and bool(jnp.all(out3 == state3))

    # 5) Non-128-divisible flattened size exercises the tiled fallback
    #    (full-extent last dim, row tiling retained).
    state4 = jax.random.normal(jax.random.PRNGKey(0), (16, 3, 5, 7),
                               dtype=jnp.float32)
    body_f = BaseBodyPallas((3, 5, 7), feature_dim, use_pallas_scaffold=True)
    out4 = jax.block_until_ready(body_f(state4))
    assert out4.shape == state4.shape and jnp.allclose(out4, state4)

    print("KERNEL_OK")
</pallas_src>

<mosaic_0001>
module attributes {stable_mosaic.version = 11 : i64} {
  func.func @_base_body_kernel(%arg0: i32, %arg1: memref<8x256xf32, #tpu.memory_space<vmem>>, %arg2: memref<8x256xf32, #tpu.memory_space<vmem>>) attributes {dimension_semantics = [#tpu.dimension_semantics<parallel>], iteration_bounds = array<i64: 1>, scalar_prefetch = 0 : i64, scratch_operands = 0 : i64, tpu.core_type = #tpu.core_type<tc>, window_params = [{transform_indices = @transform_0, window_bounds = array<i64: 8, 256>}, {transform_indices = @transform_1, window_bounds = array<i64: 8, 256>}]} {
    %c0 = arith.constant 0 : index
    %c0_0 = arith.constant 0 : index
    %0 = vector.load %arg1[%c0, %c0_0] : memref<8x256xf32, #tpu.memory_space<vmem>>, vector<8x256xf32>
    %c0_1 = arith.constant 0 : index
    %c0_2 = arith.constant 0 : index
    %1 = vector.load %arg2[%c0_1, %c0_2] : memref<8x256xf32, #tpu.memory_space<vmem>>, vector<8x256xf32>
    tpu.vector_store %arg2[%c0_1, %c0_2], %0 {strides = array<i32>} : memref<8x256xf32, #tpu.memory_space<vmem>>, vector<8x256xf32>,
    return
  }
  func.func @transform_0(%arg0: i32) -> (i32, i32) {
    %c0_i32 = arith.constant 0 : i32
    %c0_i32_0 = arith.constant 0 : i32
    return %arg0, %c0_i32 : i32, i32
  }
  func.func @transform_1(%arg0: i32) -> (i32, i32) {
    %c0_i32 = arith.constant 0 : i32
    %c0_i32_0 = arith.constant 0 : i32
    return %arg0, %c0_i32 : i32, i32
  }
}

</mosaic_0001>

<llo_original>
// kernel: tpu_custom_call.1
$region0: #{tpu_custom_call.1}
  #allocation0 [shape = 'u32[]', space=smem, size = 0x4, offset = 0x4, fixed_abs, tag = 'smem constant byte address 0x4 - core index']
  #allocation1 [shape = 'u32[72,128]{1,0:T(1,128)}', space=vmem, size = 0x9000, scoped, tag = 'internal scratch']
  %s0 = inlined_call_operand.hbm [shape: f32[8,256], index: 0, kind: input, shape index: {}]
  %s1 = inlined_call_operand.hbm [shape: f32[8,256], index: 1, kind: output, shape index: {}]
  %s2 = sld [smem:[#allocation0]]
  $region18: #{tpu_custom_call.1} parent=0
    _
  %s4 = ssub.s32 1, %s2
  %s5 = scalar_select 0, %s4, %s2
  $region1: #{tpu_custom_call.1} parent=0
    #allocation2 [shape = 'u8[8192]{0}', space=vmem, size = 0x2000, scoped, tag = 'input window, operand 0, single buffered']
    #allocation3 [shape = 's32[1]{0}', space=sflag, size = 0x4, scoped, tag = 'scoped memory for tpu_custom_call.1']
    #allocation4 [shape = 's32[1]{0}', space=sflag, size = 0x4, scoped, tag = 'scoped memory for tpu_custom_call.1']
    #allocation5 [shape = 'u8[8192]{0}', space=vmem, size = 0x2000, scoped, tag = 'output window, operand 0, single buffered']
    %6 = vsyncpa [#allocation3], 0
    %7 = vsyncpa [#allocation4], 0
    // Predicated region
    $region2: #{tpu_custom_call.1} parent=1 // pred_check
      _
    $region3: #{tpu_custom_call.1} parent=1 // pred_check_branch
      %9 = sbr.rel (0) target = $region5
    $region4: #{tpu_custom_call.1} parent=1 // pred_region
      %11 = vsyncadd [#allocation3], 0
      %s13 = sshll.u32 %s0, 4
      %s14 = int_to_ptr.hbm [resolvable:$true] %s13
      %s15 = sshll.u32 [#allocation2], 4
      %s16 = int_to_ptr.vmem [resolvable:$true] %s15
      %18 = dma.hbm_to_vmem [thread:$0]  %s14, 256, %s16, [#allocation3]
    $region5: #{tpu_custom_call.1} parent=1 // pred_fallthru
      _
    // Predicated region
    $region6: #{tpu_custom_call.1} parent=1 // pred_check
      _
    $region7: #{tpu_custom_call.1} parent=1 // pred_check_branch
      %20 = sbr.rel (0) target = $region9
    $region8: #{tpu_custom_call.1} parent=1 // pred_region
      %22 = dma.done [#allocation3], 256
    $region9: #{tpu_custom_call.1} parent=1 // pred_fallthru
      _
    %v23 = vld [vmem:[#allocation2] sm:$0xff]
    %v24 = vld [vmem:[#allocation2 + $0x8] sm:$0xff]
    %25 = vst [vmem:[#allocation5] sm:$0xff] %v23
    %26 = vst [vmem:[#allocation5 + $0x8] sm:$0xff] %v24
    // Predicated region
    $region10: #{tpu_custom_call.1} parent=1 // pred_check
      _
    $region11: #{tpu_custom_call.1} parent=1 // pred_check_branch
      %28 = sbr.rel (0) target = $region13
    $region12: #{tpu_custom_call.1} parent=1 // pred_region
      %30 = vsyncadd [#allocation4], 0
      %s32 = sshll.u32 [#allocation5], 4
      %s33 = int_to_ptr.vmem [resolvable:$true] %s32
      %s34 = sshll.u32 %s1, 4
      %s35 = int_to_ptr.hbm [resolvable:$true] %s34
      %37 = dma.vmem_to_hbm [thread:$0]  %s33, 256, %s35, [#allocation4]
    $region13: #{tpu_custom_call.1} parent=1 // pred_fallthru
      _
    // Predicated region
    $region14: #{tpu_custom_call.1} parent=1 // pred_check
      _
    $region15: #{tpu_custom_call.1} parent=1 // pred_check_branch
      %39 = sbr.rel (0) target = $region17
    $region16: #{tpu_custom_call.1} parent=1 // pred_region
      %41 = dma.done [#allocation4], 256
    $region17: #{tpu_custom_call.1} parent=1 // pred_fallthru
      _
    %42 = vsyncpa [#allocation3], 1
    %43 = vsyncpa [#allocation4], 1

</llo_original>
